<compile_context>
chip_gen: v6e
topology: v6e:2x2x1
jax: 0.10.0
libtpu: 0.0.40
codegen_flags: <defaults>
</compile_context>

<pallas_src>
import numpy as np
import jax
import jax.numpy as jnp
from jax.experimental import pallas as pl
from jax.experimental.pallas import tpu as pltpu


def _upsample_matrix(out_size, in_size):
    """Row o = 1-D linear interpolation weights with align_corners=True."""
    M = np.zeros((out_size, in_size), np.float32)
    if in_size == 1:
        M[:, 0] = 1.0
        return M
    for o in range(out_size):
        src = o * (in_size - 1) / (out_size - 1)
        i0 = min(int(np.floor(src)), in_size - 2)
        f = src - i0
        M[o, i0] += 1.0 - f
        M[o, i0 + 1] += f
    return M


def _spatial_conv_scatter_indices(H, W, H1, W1):
    """Indices to build per-temporal-tap spatial conv matrices.

    M[a][hi*W + wi, ho*W1 + wo] = w1[a, kb, kc] with hi = 2*ho + kb - 1,
    wi = 2*wo + kc - 1 (stride 2, padding 1); out-of-range taps are dropped.
    """
    a_idx, r_idx, c_idx, k_idx = [], [], [], []
    for a in range(3):
        for kb in range(3):
            for kc in range(3):
                k = a * 9 + kb * 3 + kc
                for ho in range(H1):
                    hi = 2 * ho + kb - 1
                    if hi < 0 or hi >= H:
                        continue
                    for wo in range(W1):
                        wi = 2 * wo + kc - 1
                        if wi < 0 or wi >= W:
                            continue
                        a_idx.append(a)
                        r_idx.append(hi * W + wi)
                        c_idx.append(ho * W1 + wo)
                        k_idx.append(k)
    return (np.asarray(a_idx, np.int32), np.asarray(r_idx, np.int32),
            np.asarray(c_idx, np.int32), np.asarray(k_idx, np.int32))


def _temporal_select_matrix(T, T1):
    """Q[t1, a*T + t] = 1 iff t == 2*t1 + a - 1 (temporal stride 2, pad 1)."""
    Q = np.zeros((T1, 3 * T), np.float32)
    for t1 in range(T1):
        for a in range(3):
            t = 2 * t1 + a - 1
            if 0 <= t < T:
                Q[t1, a * T + t] = 1.0
    return Q


def _pick_c_block(C, bytes_per_channel, target_bytes=8 * 1024 * 1024):
    """Largest divisor of C whose (Cblk, T, H*W) slab stays <= target_bytes."""
    max_c = max(1, target_bytes // max(bytes_per_channel, 1))
    best = 1
    for d in range(1, C + 1):
        if C % d == 0 and d <= max_c:
            best = d
    return best


def _make_kernel(inv_c, inv_t):
    def kernel(x_ref, m_ref, q_ref, mhw_ref, mt_ref, prm_ref, out_ref, xacc_ref):
        c = pl.program_id(1)

        @pl.when(c == 0)
        def _():
            xacc_ref[...] = jnp.zeros_like(xacc_ref)

        # channel partial-sum for this C chunk (lane-dense (T, H*W) slabs, VPU).
        xacc_ref[...] += jnp.sum(x_ref[0].astype(jnp.float32), axis=0)

        @pl.when(c == pl.num_programs(1) - 1)
        def _():
            sc1 = prm_ref[0]   # folded conv1-bias + BN1 scale
            sh1 = prm_ref[1]   # folded conv1-bias + BN1 shift
            sc2 = prm_ref[2]   # folded conv2(1x1x1) + BN2 scale
            sh2 = prm_ref[3]   # folded conv2(1x1x1) + BN2 shift

            xm = xacc_ref[...] * inv_c                          # (T, H*W)

            # conv1 (3x3x3, s=2, p=1): spatial taps = 3 MXU matmuls, temporal
            # stride-2 tap-sum = one tiny constant matmul (Q).  Padding and
            # stride live entirely in the constant matrices.
            z0 = jnp.dot(xm, m_ref[0], preferred_element_type=jnp.float32)
            z1 = jnp.dot(xm, m_ref[1], preferred_element_type=jnp.float32)
            z2 = jnp.dot(xm, m_ref[2], preferred_element_type=jnp.float32)
            zcat = jnp.concatenate([z0, z1, z2], axis=0)        # (3T, H1*W1)
            y = jnp.dot(q_ref[...], zcat,
                        preferred_element_type=jnp.float32)     # (T1, H1*W1)

            # conv1 bias + BN1(eval) + ReLU folded into one affine + relu.
            y = jnp.maximum(y * sc1 + sh1, 0.0)

            # trilinear H/W upsample (align_corners=True): one kron(MH,MW) matmul.
            zs = jnp.dot(y, mhw_ref[...],
                         preferred_element_type=jnp.float32)    # (T1, Hup*Wup)

            # T upsample (matmul) + conv2(1x1x1)+BN2(eval)+ReLU + avg_pool over T.
            u = jnp.dot(mt_ref[...], zs,
                        preferred_element_type=jnp.float32)     # (Tup, Hup*Wup)
            u = jnp.maximum(u * sc2 + sh2, 0.0)
            out_ref[...] = (jnp.sum(u, axis=0) * inv_t).reshape(out_ref.shape)

    return kernel


def spatial_attn(x, w1, b1, bn1, w2, b2, bn2, *, c_chunk_bytes=8 * 1024 * 1024):
    N, C, T, H, W = x.shape
    HW = H * W

    # conv1 output sizes (k=3, s=2, p=1) and x2 upsample sizes.
    T1 = (T - 1) // 2 + 1
    H1 = (H - 1) // 2 + 1
    W1 = (W - 1) // 2 + 1
    Tup, Hup, Wup = 2 * T1, 2 * H1, 2 * W1
    H1W1, HupWup = H1 * W1, Hup * Wup

    # ---- trace-time constants (parameter prep, not data path) --------------
    a_idx, r_idx, c_idx, k_idx = _spatial_conv_scatter_indices(H, W, H1, W1)
    w1_flat = jnp.asarray(w1, jnp.float32).reshape(27)
    m_spat = jnp.zeros((3, HW, H1W1), jnp.float32)
    m_spat = m_spat.at[a_idx, r_idx, c_idx].add(w1_flat[k_idx])   # (3, HW, H1W1)

    q_temp = jnp.asarray(_temporal_select_matrix(T, T1))          # (T1, 3T)
    mh = _upsample_matrix(Hup, H1)
    mw = _upsample_matrix(Wup, W1)
    mhw_t = jnp.asarray(np.kron(mh, mw).T)                        # (H1W1, HupWup)
    mt = jnp.asarray(_upsample_matrix(Tup, T1))                   # (Tup, T1)

    # fold conv biases + eval-mode batchnorms into affine scale/shift.
    g1, be1, rm1, rv1, eps1 = bn1
    g2, be2, rm2, rv2, eps2 = bn2
    inv1 = 1.0 / jnp.sqrt(rv1 + eps1)
    inv2 = 1.0 / jnp.sqrt(rv2 + eps2)
    sc1 = g1 * inv1
    sh1 = (b1 - rm1) * g1 * inv1 + be1
    sc2 = w2 * g2 * inv2
    sh2 = (b2 - rm2) * g2 * inv2 + be2
    prm = jnp.stack([sc1, sh1, sc2, sh2]).astype(jnp.float32)

    # ---- lane-dense view + channel tiling -----------------------------------
    x4 = x.reshape(N, C, T, HW)                   # free contiguous reshape
    cblk = _pick_c_block(C, T * HW * x.dtype.itemsize, c_chunk_bytes)
    nc = C // cblk

    kernel = _make_kernel(1.0 / C, 1.0 / Tup)
    out = pl.pallas_call(
        kernel,
        out_shape=jax.ShapeDtypeStruct((N, 1, HupWup), jnp.float32),
        grid=(N, nc),
        in_specs=[
            pl.BlockSpec((1, cblk, T, HW), lambda n, c: (n, c, 0, 0)),  # x
            pl.BlockSpec((3, HW, H1W1), lambda n, c: (0, 0, 0)),        # m_spat
            pl.BlockSpec((T1, 3 * T), lambda n, c: (0, 0)),             # q_temp
            pl.BlockSpec((H1W1, HupWup), lambda n, c: (0, 0)),          # mhw_t
            pl.BlockSpec((Tup, T1), lambda n, c: (0, 0)),               # mt
            pl.BlockSpec(memory_space=pltpu.MemorySpace.SMEM),          # prm
        ],
        out_specs=pl.BlockSpec((1, 1, HupWup), lambda n, c: (n, 0, 0)),
        scratch_shapes=[pltpu.VMEM((T, HW), jnp.float32)],
        compiler_params=pltpu.CompilerParams(
            dimension_semantics=("parallel", "arbitrary"),
            vmem_limit_bytes=32 * 1024 * 1024),
    )(x4, m_spat, q_temp, mhw_t, mt, prm)

    return out.reshape(N, 1, 1, Hup, Wup)


def _reference(x, w1, b1, bn1, w2, b2, bn2):
    """Pure-JAX (XLA) reference of the same eval-mode forward pass."""
    x = x.astype(jnp.float32)
    N, C, T, H, W = x.shape
    T1 = (T - 1) // 2 + 1
    H1 = (H - 1) // 2 + 1
    W1 = (W - 1) // 2 + 1
    Tup, Hup, Wup = 2 * T1, 2 * H1, 2 * W1
    g1, be1, rm1, rv1, eps1 = bn1
    g2, be2, rm2, rv2, eps2 = bn2

    xm = jnp.mean(x, axis=1, keepdims=True)
    y = jax.lax.conv_general_dilated(
        xm, jnp.asarray(w1, jnp.float32), (2, 2, 2),
        ((1, 1), (1, 1), (1, 1)),
        dimension_numbers=("NCDHW", "OIDHW", "NCDHW"),
        precision=jax.lax.Precision.HIGHEST) + b1
    y = jax.nn.relu((y - rm1) / jnp.sqrt(rv1 + eps1) * g1 + be1)
    mt = jnp.asarray(_upsample_matrix(Tup, T1))
    mh = jnp.asarray(_upsample_matrix(Hup, H1))
    mw = jnp.asarray(_upsample_matrix(Wup, W1))
    y = jnp.einsum("at,bh,cw,nkthw->nkabc", mt, mh, mw, y, precision="highest")
    y = w2 * y + b2
    y = jax.nn.relu((y - rm2) / jnp.sqrt(rv2 + eps2) * g2 + be2)
    return jnp.mean(y, axis=2, keepdims=True)


if __name__ == "__main__":
    key = jax.random.PRNGKey(0)
    kx, k1, kb1, k2, kb2 = jax.random.split(key, 5)

    N, C, T, H, W = 2, 4, 8, 16, 16
    x = jax.random.normal(kx, (N, C, T, H, W), jnp.float32)

    # conv1: Conv3d(1, 1, 3, stride=2, padding=1): weight (1,1,3,3,3), bias ()
    w1 = 0.2 * jax.random.normal(k1, (1, 1, 3, 3, 3), jnp.float32)
    b1 = 0.1 * jax.random.normal(kb1, (), jnp.float32)
    # conv2: Conv3d(1, 1, 1): scalar weight, scalar bias
    w2 = 0.5 + 0.2 * jax.random.normal(k2, (), jnp.float32)
    b2 = 0.1 * jax.random.normal(kb2, (), jnp.float32)
    # BatchNorm3d (eval mode): (gamma, beta, running_mean, running_var, eps)
    bn1 = (jnp.float32(1.1), jnp.float32(0.05), jnp.float32(0.02),
           jnp.float32(0.9), jnp.float32(1e-5))
    bn2 = (jnp.float32(0.9), jnp.float32(-0.03), jnp.float32(0.01),
           jnp.float32(1.1), jnp.float32(1e-5))

    out = spatial_attn(x, w1, b1, bn1, w2, b2, bn2)
    out = jax.block_until_ready(out)
    assert out.shape == (N, 1, 1, H, W), out.shape
    assert bool(jnp.all(jnp.isfinite(out)))

    ref = _reference(x, w1, b1, bn1, w2, b2, bn2)
    ref = jax.block_until_ready(ref)
    assert ref.shape == out.shape, (ref.shape, out.shape)
    max_err = float(jnp.max(jnp.abs(out - ref)))
    assert max_err < 5e-3, max_err

    print("KERNEL_OK")
</pallas_src>

<mosaic_0001>
module attributes {stable_mosaic.version = 11 : i64} {
  func.func @kernel(%arg0: i32, %arg1: i32, %arg2: memref<1x4x8x256xf32, #tpu.memory_space<vmem>>, %arg3: memref<3x256x64xf32, #tpu.memory_space<vmem>>, %arg4: memref<4x24xf32, #tpu.memory_space<vmem>>, %arg5: memref<64x256xf32, #tpu.memory_space<vmem>>, %arg6: memref<8x4xf32, #tpu.memory_space<vmem>>, %arg7: memref<4xf32, #tpu.memory_space<smem>>, %arg8: memref<1x1x256xf32, #tpu.memory_space<vmem>>, %arg9: memref<8x256xf32, #tpu.memory_space<vmem>>) attributes {dimension_semantics = [#tpu.dimension_semantics<parallel>, #tpu.dimension_semantics<arbitrary>], iteration_bounds = array<i64: 2, 1>, scalar_prefetch = 0 : i64, scratch_operands = 1 : i64, tpu.core_type = #tpu.core_type<tc>, window_params = [{transform_indices = @transform_0, window_bounds = array<i64: 1, 4, 8, 256>}, {pipeline_mode = #tpu.pipeline_mode<synchronous>, transform_indices = @transform_1, window_bounds = array<i64: 3, 256, 64>}, {pipeline_mode = #tpu.pipeline_mode<synchronous>, transform_indices = @transform_2, window_bounds = array<i64: 4, 24>}, {pipeline_mode = #tpu.pipeline_mode<synchronous>, transform_indices = @transform_3, window_bounds = array<i64: 64, 256>}, {pipeline_mode = #tpu.pipeline_mode<synchronous>, transform_indices = @transform_4, window_bounds = array<i64: 8, 4>}, {transform_indices = @transform_5, window_bounds = array<i64: 4>}, {transform_indices = @transform_6, window_bounds = array<i64: 1, 1, 256>}]} {
    %c0_i32 = arith.constant 0 : i32
    %0 = arith.cmpi eq, %arg1, %c0_i32 : i32
    %1 = arith.extui %0 : i1 to i32
    %c0_i32_0 = arith.constant 0 : i32
    %2 = arith.cmpi ne, %1, %c0_i32_0 : i32
    scf.if %2 {
      %cst_10 = arith.constant 0.000000e+00 : f32
      %12 = vector.broadcast %cst_10 : f32 to vector<8x256xf32>
      %c0_11 = arith.constant 0 : index
      %c0_12 = arith.constant 0 : index
      %13 = vector.load %arg9[%c0_11, %c0_12] : memref<8x256xf32, #tpu.memory_space<vmem>>, vector<8x256xf32>
      tpu.vector_store %arg9[%c0_11, %c0_12], %12 {strides = array<i32>} : memref<8x256xf32, #tpu.memory_space<vmem>>, vector<8x256xf32>,
    } else {
    }
    %c0 = arith.constant 0 : index
    %c0_1 = arith.constant 0 : index
    %3 = vector.load %arg9[%c0, %c0_1] : memref<8x256xf32, #tpu.memory_space<vmem>>, vector<8x256xf32>
    %c0_2 = arith.constant 0 : index
    %c0_3 = arith.constant 0 : index
    %c0_4 = arith.constant 0 : index
    %c0_5 = arith.constant 0 : index
    %4 = vector.load %arg2[%c0_2, %c0_3, %c0_4, %c0_5] : memref<1x4x8x256xf32, #tpu.memory_space<vmem>>, vector<1x4x8x256xf32>
    %5 = vector.shape_cast %4 : vector<1x4x8x256xf32> to vector<4x8x256xf32>
    %cst = arith.constant dense<0.000000e+00> : vector<8x256xf32>
    %6 = vector.multi_reduction <add>, %5, %cst [0] : vector<4x8x256xf32> to vector<8x256xf32>
    %7 = arith.addf %3, %6 : vector<8x256xf32>
    %c0_6 = arith.constant 0 : index
    %c0_7 = arith.constant 0 : index
    %8 = vector.load %arg9[%c0_6, %c0_7] : memref<8x256xf32, #tpu.memory_space<vmem>>, vector<8x256xf32>
    tpu.vector_store %arg9[%c0_6, %c0_7], %7 {strides = array<i32>} : memref<8x256xf32, #tpu.memory_space<vmem>>, vector<8x256xf32>,
    %c0_i32_8 = arith.constant 0 : i32
    %9 = arith.cmpi eq, %arg1, %c0_i32_8 : i32
    %10 = arith.extui %9 : i1 to i32
    %c0_i32_9 = arith.constant 0 : i32
    %11 = arith.cmpi ne, %10, %c0_i32_9 : i32
    scf.if %11 {
      %c0_10 = arith.constant 0 : index
      %12 = memref.load %arg7[%c0_10] : memref<4xf32, #tpu.memory_space<smem>>
      %c1 = arith.constant 1 : index
      %13 = memref.load %arg7[%c1] : memref<4xf32, #tpu.memory_space<smem>>
      %c2 = arith.constant 2 : index
      %14 = memref.load %arg7[%c2] : memref<4xf32, #tpu.memory_space<smem>>
      %c3 = arith.constant 3 : index
      %15 = memref.load %arg7[%c3] : memref<4xf32, #tpu.memory_space<smem>>
      %c0_11 = arith.constant 0 : index
      %c0_12 = arith.constant 0 : index
      %16 = vector.load %arg9[%c0_11, %c0_12] : memref<8x256xf32, #tpu.memory_space<vmem>>, vector<8x256xf32>
      %cst_13 = arith.constant 2.500000e-01 : f32
      %17 = vector.broadcast %cst_13 : f32 to vector<8x256xf32>
      %18 = arith.mulf %16, %17 : vector<8x256xf32>
      %c0_14 = arith.constant 0 : index
      %c0_15 = arith.constant 0 : index
      %c0_16 = arith.constant 0 : index
      %19 = vector.load %arg3[%c0_14, %c0_15, %c0_16] : memref<3x256x64xf32, #tpu.memory_space<vmem>>, vector<1x256x64xf32>
      %20 = vector.shape_cast %19 : vector<1x256x64xf32> to vector<256x64xf32>
      %cst_17 = arith.constant dense<0.000000e+00> : vector<8x64xf32>
      %21 = tpu.matmul %18, %20, %cst_17 {dimension_numbers = #tpu.dot_dimension_numbers<[1], [0], [0], [1], [0, 0, 1, 1], [], []>} : vector<8x256xf32>, vector<256x64xf32>, vector<8x64xf32> -> vector<8x64xf32>
      %c1_18 = arith.constant 1 : index
      %c0_19 = arith.constant 0 : index
      %c0_20 = arith.constant 0 : index
      %22 = vector.load %arg3[%c1_18, %c0_19, %c0_20] : memref<3x256x64xf32, #tpu.memory_space<vmem>>, vector<1x256x64xf32>
      %23 = vector.shape_cast %22 : vector<1x256x64xf32> to vector<256x64xf32>
      %cst_21 = arith.constant dense<0.000000e+00> : vector<8x64xf32>
      %24 = tpu.matmul %18, %23, %cst_21 {dimension_numbers = #tpu.dot_dimension_numbers<[1], [0], [0], [1], [0, 0, 1, 1], [], []>} : vector<8x256xf32>, vector<256x64xf32>, vector<8x64xf32> -> vector<8x64xf32>
      %c2_22 = arith.constant 2 : index
      %c0_23 = arith.constant 0 : index
      %c0_24 = arith.constant 0 : index
      %25 = vector.load %arg3[%c2_22, %c0_23, %c0_24] : memref<3x256x64xf32, #tpu.memory_space<vmem>>, vector<1x256x64xf32>
      %26 = vector.shape_cast %25 : vector<1x256x64xf32> to vector<256x64xf32>
      %cst_25 = arith.constant dense<0.000000e+00> : vector<8x64xf32>
      %27 = tpu.matmul %18, %26, %cst_25 {dimension_numbers = #tpu.dot_dimension_numbers<[1], [0], [0], [1], [0, 0, 1, 1], [], []>} : vector<8x256xf32>, vector<256x64xf32>, vector<8x64xf32> -> vector<8x64xf32>
      %28 = tpu.concatenate %21, %24, %27 in 0 : vector<8x64xf32>, vector<8x64xf32>, vector<8x64xf32> -> vector<24x64xf32>
      %c0_26 = arith.constant 0 : index
      %c0_27 = arith.constant 0 : index
      %29 = vector.load %arg4[%c0_26, %c0_27] : memref<4x24xf32, #tpu.memory_space<vmem>>, vector<4x24xf32>
      %cst_28 = arith.constant dense<0.000000e+00> : vector<4x64xf32>
      %30 = tpu.matmul %29, %28, %cst_28 {dimension_numbers = #tpu.dot_dimension_numbers<[1], [0], [0], [1], [0, 0, 1, 1], [], []>} : vector<4x24xf32>, vector<24x64xf32>, vector<4x64xf32> -> vector<4x64xf32>
      %31 = vector.broadcast %12 : f32 to vector<4x64xf32>
      %32 = arith.mulf %30, %31 : vector<4x64xf32>
      %33 = vector.broadcast %13 : f32 to vector<4x64xf32>
      %34 = arith.addf %32, %33 : vector<4x64xf32>
      %cst_29 = arith.constant 0.000000e+00 : f32
      %35 = vector.broadcast %cst_29 : f32 to vector<4x64xf32>
      %36 = arith.maximumf %34, %35 : vector<4x64xf32>
      %c0_30 = arith.constant 0 : index
      %c0_31 = arith.constant 0 : index
      %37 = vector.load %arg5[%c0_30, %c0_31] : memref<64x256xf32, #tpu.memory_space<vmem>>, vector<64x256xf32>
      %cst_32 = arith.constant dense<0.000000e+00> : vector<4x256xf32>
      %38 = tpu.matmul %36, %37, %cst_32 {dimension_numbers = #tpu.dot_dimension_numbers<[1], [0], [0], [1], [0, 0, 1, 1], [], []>} : vector<4x64xf32>, vector<64x256xf32>, vector<4x256xf32> -> vector<4x256xf32>
      %c0_33 = arith.constant 0 : index
      %c0_34 = arith.constant 0 : index
      %39 = vector.load %arg6[%c0_33, %c0_34] : memref<8x4xf32, #tpu.memory_space<vmem>>, vector<8x4xf32>
      %cst_35 = arith.constant dense<0.000000e+00> : vector<8x256xf32>
      %40 = tpu.matmul %39, %38, %cst_35 {dimension_numbers = #tpu.dot_dimension_numbers<[1], [0], [0], [1], [0, 0, 1, 1], [], []>} : vector<8x4xf32>, vector<4x256xf32>, vector<8x256xf32> -> vector<8x256xf32>
      %41 = vector.broadcast %14 : f32 to vector<8x256xf32>
      %42 = arith.mulf %40, %41 : vector<8x256xf32>
      %43 = vector.broadcast %15 : f32 to vector<8x256xf32>
      %44 = arith.addf %42, %43 : vector<8x256xf32>
      %cst_36 = arith.constant 0.000000e+00 : f32
      %45 = vector.broadcast %cst_36 : f32 to vector<8x256xf32>
      %46 = arith.maximumf %44, %45 : vector<8x256xf32>
      %cst_37 = arith.constant dense<0.000000e+00> : vector<256xf32>
      %47 = vector.multi_reduction <add>, %46, %cst_37 [0] : vector<8x256xf32> to vector<256xf32>
      %cst_38 = arith.constant 1.250000e-01 : f32
      %48 = vector.broadcast %cst_38 : f32 to vector<256xf32>
      %49 = arith.mulf %47, %48 : vector<256xf32>
      %50 = vector.shape_cast %49 : vector<256xf32> to vector<1x1x256xf32>
      %c0_39 = arith.constant 0 : index
      %c0_40 = arith.constant 0 : index
      %c0_41 = arith.constant 0 : index
      %51 = vector.load %arg8[%c0_39, %c0_40, %c0_41] : memref<1x1x256xf32, #tpu.memory_space<vmem>>, vector<1x1x256xf32>
      tpu.vector_store %arg8[%c0_39, %c0_40, %c0_41], %50 {strides = array<i32>} : memref<1x1x256xf32, #tpu.memory_space<vmem>>, vector<1x1x256xf32>,
    } else {
    }
    return
  }
  func.func @transform_0(%arg0: i32, %arg1: i32) -> (i32, i32, i32, i32) {
    %c0_i32 = arith.constant 0 : i32
    %c0_i32_0 = arith.constant 0 : i32
    %c0_i32_1 = arith.constant 0 : i32
    return %arg0, %arg1, %c0_i32, %c0_i32_0 : i32, i32, i32, i32
  }
  func.func @transform_1(%arg0: i32, %arg1: i32) -> (i32, i32, i32) {
    %c0_i32 = arith.constant 0 : i32
    %c0_i32_0 = arith.constant 0 : i32
    %c0_i32_1 = arith.constant 0 : i32
    %c0_i32_2 = arith.constant 0 : i32
    return %c0_i32, %c0_i32_0, %c0_i32_1 : i32, i32, i32
  }
  func.func @transform_2(%arg0: i32, %arg1: i32) -> (i32, i32) {
    %c0_i32 = arith.constant 0 : i32
    %c0_i32_0 = arith.constant 0 : i32
    %c0_i32_1 = arith.constant 0 : i32
    return %c0_i32, %c0_i32_0 : i32, i32
  }
  func.func @transform_3(%arg0: i32, %arg1: i32) -> (i32, i32) {
    %c0_i32 = arith.constant 0 : i32
    %c0_i32_0 = arith.constant 0 : i32
    %c0_i32_1 = arith.constant 0 : i32
    return %c0_i32, %c0_i32_0 : i32, i32
  }
  func.func @transform_4(%arg0: i32, %arg1: i32) -> (i32, i32) {
    %c0_i32 = arith.constant 0 : i32
    %c0_i32_0 = arith.constant 0 : i32
    %c0_i32_1 = arith.constant 0 : i32
    return %c0_i32, %c0_i32_0 : i32, i32
  }
  func.func @transform_5(%arg0: i32, %arg1: i32) -> i32 {
    %c0_i32 = arith.constant 0 : i32
    %c0_i32_0 = arith.constant 0 : i32
    return %c0_i32 : i32
  }
  func.func @transform_6(%arg0: i32, %arg1: i32) -> (i32, i32, i32) {
    %c0_i32 = arith.constant 0 : i32
    %c0_i32_0 = arith.constant 0 : i32
    %c0_i32_1 = arith.constant 0 : i32
    return %arg0, %c0_i32, %c0_i32_0 : i32, i32, i32
  }
}

</mosaic_0001>

<llo_original>
// kernel: tpu_custom_call.1
$region0: #{tpu_custom_call.1}
  #allocation0 [shape = 'u32[]', space=smem, size = 0x4, offset = 0x4, fixed_abs, tag = 'smem constant byte address 0x4 - core index']
  #allocation1 [shape = 'u32[144,128]{1,0:T(1,128)}', space=vmem, size = 0x12000, scoped, tag = 'internal scratch']
  #allocation2 [shape = 'f32[8,256]{1,0:T(8,128)}', space=vmem, size = 0x2000, scoped, tag = 'scratch operand']
  %s0 = inlined_call_operand.vmem [shape: f32[2,4,8,256], index: 0, kind: input, shape index: {}]
  %s1 = inlined_call_operand.vmem [shape: f32[3,256,64], index: 1, kind: input, shape index: {}]
  %s2 = inlined_call_operand.vmem [shape: f32[4,24], index: 2, kind: input, shape index: {}]
  %s3 = inlined_call_operand.vmem [shape: f32[64,256], index: 3, kind: input, shape index: {}]
  %s4 = inlined_call_operand.vmem [shape: f32[8,4], index: 4, kind: input, shape index: {}]
  %s5 = inlined_call_operand.vmem [shape: f32[4], index: 5, kind: input, shape index: {}]
  %s6 = inlined_call_operand.hbm [shape: f32[2,1,256], index: 6, kind: output, shape index: {}]
  %s7 = sld [smem:[#allocation0]]
  $region69: #{tpu_custom_call.1} parent=0
    _
  %s9 = ssub.s32 1, %s7
  %s10 = scalar_select 0, %s9, %s7
  $region1: #{tpu_custom_call.1} parent=0
    #allocation3 [shape = 'u8[512]{0}', space=smem, size = 0x200, scoped, tag = 'input window, operand 5, single buffered']
    #allocation4 [shape = 's32[2]{0}', space=sflag, size = 0x8, scoped, tag = 'scoped memory for tpu_custom_call.1']
    #allocation5 [shape = 's32[2]{0}', space=sflag, size = 0x8, scoped, tag = 'scoped memory for tpu_custom_call.1']
    #allocation6 [shape = 'u8[2048]{0}', space=vmem, size = 0x800, scoped, tag = 'output window, operand 0']
    %11 = vsyncpa [#allocation5], 0
    %12 = vsyncpa [#allocation4], 0
    %s13 = scalar_lea.sflag [#allocation4], 1
    %14 = vsyncpa %s13, 0
    loop: start=0, step=1, limit=4
    $region2: #{tpu_custom_call.1} parent=1 // loop_pre_header
      _
    $region3: #{tpu_custom_call.1} parent=1 // loop_header
      %s16 = sphi 0, %s20
      %p17 = scmp.ge.s32.totalorder %s16, 4
      %s23 = sphi 0, %s35
      %s24 = sphi 0, %s31
      %s25 = sphi 0, %s23
      %s26 = sphi 0, %s24
      %s27 = sphi 0, %s25
      %s28 = sphi 0, %s26
      %s40 = sphi 0, %s42
      %s43 = sphi 0, %s40
      %s44 = sphi 0, %s43
      %s60 = sphi 0, %s44
      %s64 = sphi 0, %s64
      %s66 = sphi 0, %s64
      %s67 = sphi 0, %s66
      %s81 = sphi 0, %s67
      %s85 = sphi 0, %s85
      %s87 = sphi 0, %s85
      %s88 = sphi 0, %s87
      %s102 = sphi 0, %s88
      %s106 = sphi 0, %s106
      %s108 = sphi 0, %s106
      %s109 = sphi 0, %s108
      %s123 = sphi 0, %s109
      %s127 = sphi 0, %s127
      %s129 = sphi 0, %s127
      %s130 = sphi 0, %s129
      %s144 = sphi 0, %s130
      %s148 = sphi 0, %s148
      %s150 = sphi 0, %s148
      %s151 = sphi 0, %s150
      %s165 = sphi 0, %s151
      %s171 = sphi 0, %s173
      %s174 = sphi 0, %s171
      %s175 = sphi 0, %s174
      %s191 = sphi 0, %s175
    $region4: #{tpu_custom_call.1} parent=1 // loop_header_branch
      %19 = sbr.rel (%p17) target = $region8
    $region5: #{tpu_custom_call.1} parent=1 // loop_body
      %s21 = ssub.s32 %s16, 1
      %s22 = ssub.s32 %s16, 2
      %s29 = sadd.s32 1, %s24
      %p30 = scmp.ge.s32.totalorder %s29, 1
      %s31 = scalar_select %p30, 0, %s29
      %s32 = sadd.s32 1, %s23
      %s33 = scalar_select %p30, %s32, %s23
      %p34 = scmp.ge.s32.totalorder %s33, 2
      %s35 = scalar_select %p34, 0, %s33
      %s36 = ssub.s32 %s23, %s35
      %s37 = ssub.s32 %s24, %s31
      %s38 = sor.u32 %s36, %s37
      %p39 = scmp.eq.s32.totalorder %s38, 0
      %s41 = sadd.s32 %s40, 1
      %s42 = scalar_select %p39, %s40, %s41
      %p45 = pneg %p39
      %p46 = scmp.eq.s32.totalorder %s16, 1
      %p47 = por %p45, %p46
      %p48 = scmp.ne.s32.totalorder %s40, %s43
      %p49 = scmp.eq.s32.totalorder %s16, 0
      %p50 = por %p48, %p49
      %p51 = scmp.ne.s32.totalorder %s40, %s43
      %p52 = scmp.eq.s32.totalorder %s21, 1
      %p53 = por %p51, %p52
      %p54 = scmp.ne.s32.totalorder %s43, %s44
      %p55 = scmp.eq.s32.totalorder %s21, 0
      %p56 = por %p54, %p55
      %p57 = scmp.ne.s32.totalorder %s43, %s44
      %p58 = scmp.eq.s32.totalorder %s22, 1
      %p59 = por %p57, %p58
      %p61 = scmp.ne.s32.totalorder %s44, %s60
      %p62 = scmp.eq.s32.totalorder %s22, 0
      %p63 = por %p61, %p62
      %s65 = sadd.s32 %s64, 1
      %p68 = scmp.eq.s32.totalorder %s16, 1
      %p69 = scmp.ne.s32.totalorder %s64, %s66
      %p70 = scmp.eq.s32.totalorder %s16, 0
      %p71 = por %p69, %p70
      %p72 = scmp.ne.s32.totalorder %s64, %s66
      %p73 = scmp.eq.s32.totalorder %s21, 1
      %p74 = por %p72, %p73
      %p75 = scmp.ne.s32.totalorder %s66, %s67
      %p76 = scmp.eq.s32.totalorder %s21, 0
      %p77 = por %p75, %p76
      %p78 = scmp.ne.s32.totalorder %s66, %s67
      %p79 = scmp.eq.s32.totalorder %s22, 1
      %p80 = por %p78, %p79
      %p82 = scmp.ne.s32.totalorder %s67, %s81
      %p83 = scmp.eq.s32.totalorder %s22, 0
      %p84 = por %p82, %p83
      %s86 = sadd.s32 %s85, 1
      %p89 = scmp.eq.s32.totalorder %s16, 1
      %p90 = scmp.ne.s32.totalorder %s85, %s87
      %p91 = scmp.eq.s32.totalorder %s16, 0
      %p92 = por %p90, %p91
      %p93 = scmp.ne.s32.totalorder %s85, %s87
      %p94 = scmp.eq.s32.totalorder %s21, 1
      %p95 = por %p93, %p94
      %p96 = scmp.ne.s32.totalorder %s87, %s88
      %p97 = scmp.eq.s32.totalorder %s21, 0
      %p98 = por %p96, %p97
      %p99 = scmp.ne.s32.totalorder %s87, %s88
      %p100 = scmp.eq.s32.totalorder %s22, 1
      %p101 = por %p99, %p100
      %p103 = scmp.ne.s32.totalorder %s88, %s102
      %p104 = scmp.eq.s32.totalorder %s22, 0
      %p105 = por %p103, %p104
      %s107 = sadd.s32 %s106, 1
      %p110 = scmp.eq.s32.totalorder %s16, 1
      %p111 = scmp.ne.s32.totalorder %s106, %s108
      %p112 = scmp.eq.s32.totalorder %s16, 0
      %p113 = por %p111, %p112
      %p114 = scmp.ne.s32.totalorder %s106, %s108
      %p115 = scmp.eq.s32.totalorder %s21, 1
      %p116 = por %p114, %p115
      %p117 = scmp.ne.s32.totalorder %s108, %s109
      %p118 = scmp.eq.s32.totalorder %s21, 0
      %p119 = por %p117, %p118
      %p120 = scmp.ne.s32.totalorder %s108, %s109
      %p121 = scmp.eq.s32.totalorder %s22, 1
      %p122 = por %p120, %p121
      %p124 = scmp.ne.s32.totalorder %s109, %s123
      %p125 = scmp.eq.s32.totalorder %s22, 0
      %p126 = por %p124, %p125
      %s128 = sadd.s32 %s127, 1
      %p131 = scmp.eq.s32.totalorder %s16, 1
      %p132 = scmp.ne.s32.totalorder %s127, %s129
      %p133 = scmp.eq.s32.totalorder %s16, 0
      %p134 = por %p132, %p133
      %p135 = scmp.ne.s32.totalorder %s127, %s129
      %p136 = scmp.eq.s32.totalorder %s21, 1
      %p137 = por %p135, %p136
      %p138 = scmp.ne.s32.totalorder %s129, %s130
      %p139 = scmp.eq.s32.totalorder %s21, 0
      %p140 = por %p138, %p139
      %p141 = scmp.ne.s32.totalorder %s129, %s130
      %p142 = scmp.eq.s32.totalorder %s22, 1
      %p143 = por %p141, %p142
      %p145 = scmp.ne.s32.totalorder %s130, %s144
      %p146 = scmp.eq.s32.totalorder %s22, 0
      %p147 = por %p145, %p146
      %s149 = sadd.s32 %s148, 1
      %p152 = scmp.eq.s32.totalorder %s16, 1
      %p153 = scmp.ne.s32.totalorder %s148, %s150
      %p154 = scmp.eq.s32.totalorder %s16, 0
      %p155 = por %p153, %p154
      %p156 = scmp.ne.s32.totalorder %s148, %s150
      %p157 = scmp.eq.s32.totalorder %s21, 1
      %p158 = por %p156, %p157
      %p159 = scmp.ne.s32.totalorder %s150, %s151
      %p160 = scmp.eq.s32.totalorder %s21, 0
      %p161 = por %p159, %p160
      %p162 = scmp.ne.s32.totalorder %s150, %s151
      %p163 = scmp.eq.s32.totalorder %s22, 1
      %p164 = por %p162, %p163
      %p166 = scmp.ne.s32.totalorder %s151, %s165
      %p167 = scmp.eq.s32.totalorder %s22, 0
      %p168 = por %p166, %p167
      %s169 = ssub.s32 %s23, %s35
      %p170 = scmp.eq.s32.totalorder %s169, 0
      %s172 = sadd.s32 %s171, 1
      %s173 = scalar_select %p170, %s171, %s172
      %p176 = pneg %p170
      %p177 = scmp.eq.s32.totalorder %s16, 1
      %p178 = por %p176, %p177
      %p179 = scmp.ne.s32.totalorder %s171, %s174
      %p180 = scmp.eq.s32.totalorder %s16, 0
      %p181 = por %p179, %p180
      %p182 = scmp.ne.s32.totalorder %s171, %s174
      %p183 = scmp.eq.s32.totalorder %s21, 1
      %p184 = por %p182, %p183
      %p185 = scmp.ne.s32.totalorder %s174, %s175
      %p186 = scmp.eq.s32.totalorder %s21, 0
      %p187 = por %p185, %p186
      %p188 = scmp.ne.s32.totalorder %s174, %s175
      %p189 = scmp.eq.s32.totalorder %s22, 1
      %p190 = por %p188, %p189
      %p192 = scmp.ne.s32.totalorder %s175, %s191
      %p193 = scmp.eq.s32.totalorder %s22, 0
      %p194 = por %p192, %p193
      %p195 = scmp.le.s32.totalorder 1, %s16
      %p196 = scmp.lt.s32.totalorder %s16, 3
      %p197 = pnand %p195, %p196
      %p198 = pneg %p197
      // Predicated region
      $region9: #{tpu_custom_call.1} parent=5 // pred_check
        _
      $region10: #{tpu_custom_call.1} parent=5 // pred_check_branch
        %200 = sbr.rel (%p197) target = $region12
      $region11: #{tpu_custom_call.1} parent=5 // pred_region
        %s201 = ssub.s32 %s16, 1
        // Predicated region
        $region13: #{tpu_custom_call.1} parent=11 // pred_check
          %p202 = pneg %p77
        $region14: #{tpu_custom_call.1} parent=11 // pred_check_branch
          %204 = sbr.rel (%p202) target = $region16
        $region15: #{tpu_custom_call.1} parent=11 // pred_region
          _
        $region16: #{tpu_custom_call.1} parent=11 // pred_fallthru
          _
        // Predicated region
        $region17: #{tpu_custom_call.1} parent=11 // pred_check
          %p205 = pneg %p98
        $region18: #{tpu_custom_call.1} parent=11 // pred_check_branch
          %207 = sbr.rel (%p205) target = $region20
        $region19: #{tpu_custom_call.1} parent=11 // pred_region
          _
        $region20: #{tpu_custom_call.1} parent=11 // pred_fallthru
          _
        // Predicated region
        $region21: #{tpu_custom_call.1} parent=11 // pred_check
          %p208 = pneg %p119
        $region22: #{tpu_custom_call.1} parent=11 // pred_check_branch
          %210 = sbr.rel (%p208) target = $region24
        $region23: #{tpu_custom_call.1} parent=11 // pred_region
          _
        $region24: #{tpu_custom_call.1} parent=11 // pred_fallthru
          _
        // Predicated region
        $region25: #{tpu_custom_call.1} parent=11 // pred_check
          %p211 = pneg %p140
        $region26: #{tpu_custom_call.1} parent=11 // pred_check_branch
          %213 = sbr.rel (%p211) target = $region28
        $region27: #{tpu_custom_call.1} parent=11 // pred_region
          _
        $region28: #{tpu_custom_call.1} parent=11 // pred_fallthru
          _
        // Predicated region
        $region29: #{tpu_custom_call.1} parent=11 // pred_check
          %p214 = pneg %p161
        $region30: #{tpu_custom_call.1} parent=11 // pred_check_branch
          %216 = sbr.rel (%p214) target = $region32
        $region31: #{tpu_custom_call.1} parent=11 // pred_region
          %s218 = ssub.s32 16, 16
          %219 = vsyncadd [#allocation5], %s218
          %s221 = sshll.u32 %s5, 4
          %s222 = int_to_ptr.vmem [resolvable:$true] %s221
          %224 = dma.vmem_to_smem %s222, 16, [#allocation3], [#allocation5]
        $region32: #{tpu_custom_call.1} parent=11 // pred_fallthru
          _
      $region12: #{tpu_custom_call.1} parent=5 // pred_fallthru
        _
      %p225 = scmp.lt.s32.totalorder %s16, 2
      // Predicated region
      $region33: #{tpu_custom_call.1} parent=5 // pred_check
        %p226 = pneg %p225
      $region34: #{tpu_custom_call.1} parent=5 // pred_check_branch
        %228 = sbr.rel (%p226) target = $region36
      $region35: #{tpu_custom_call.1} parent=5 // pred_region
        // Predicated region
        $region37: #{tpu_custom_call.1} parent=35 // pred_check
          %p229 = pneg %p50
        $region38: #{tpu_custom_call.1} parent=35 // pred_check_branch
          %231 = sbr.rel (%p229) target = $region40
        $region39: #{tpu_custom_call.1} parent=35 // pred_region
          %s232 = smul.u32 4, %s24
          %p233 = scmp.lt.s32.totalorder %s23, 1
          %s234 = scalar_select %p233, %s23, 1
          %p235 = scmp.lt.s32.totalorder %s232, 3
          %s236 = scalar_select %p235, %s232, 3
          %s237 = smul.addr %s236, 2
          %s238 = smul.addr %s234, 8
          %s239 = sadd.s32 %s237, %s238
          %s240 = smul.addr %s239, 8
          %s241 = scalar_lea.vmem %s0, %s240
          %s242 = smul.u32 4, %s24
        $region40: #{tpu_custom_call.1} parent=35 // pred_fallthru
          _
      $region36: #{tpu_custom_call.1} parent=5 // pred_fallthru
        _
      %p243 = scmp.le.s32.totalorder 1, %s16
      %p244 = scmp.lt.s32.totalorder %s16, 3
      %p245 = pnand %p243, %p244
      %p246 = pneg %p245
      // Predicated region
      $region41: #{tpu_custom_call.1} parent=5 // pred_check
        _
      $region42: #{tpu_custom_call.1} parent=5 // pred_check_branch
        %248 = sbr.rel (%p245) target = $region44
      $region43: #{tpu_custom_call.1} parent=5 // pred_region
        %s249 = ssub.s32 %s16, 1
        // Predicated region
        $region45: #{tpu_custom_call.1} parent=43 // pred_check
          %p250 = pneg %p161
        $region46: #{tpu_custom_call.1} parent=43 // pred_check_branch
          %252 = sbr.rel (%p250) target = $region48
        $region47: #{tpu_custom_call.1} parent=43 // pred_region
          %253 = dma.done [#allocation5], 16
        $region48: #{tpu_custom_call.1} parent=43 // pred_fallthru
          _
        %254 = sfence
        %s255 = smul.u32 4, %s26
        %p256 = scmp.lt.s32.totalorder %s25, 1
        %s257 = scalar_select %p256, %s25, 1
        %p258 = scmp.lt.s32.totalorder %s255, 3
        %s259 = scalar_select %p258, %s255, 3
        %s260 = smul.addr %s259, 2
        %s261 = smul.addr %s257, 8
        %s262 = sadd.s32 %s260, %s261
        %s263 = smul.addr %s262, 8
        %s264 = scalar_lea.vmem %s0, %s263
        %p265 = pneg %p56
        %p266 = pneg %p53
        %p267 = pneg %p77
        %p268 = pneg %p74
        %p269 = pneg %p98
        %p270 = pneg %p95
        %p271 = pneg %p119
        %p272 = pneg %p116
        %p273 = pneg %p140
        %p274 = pneg %p137
        %p275 = pneg %p161
        %p276 = pneg %p158
        %p277 = pneg %p187
        %p278 = pneg %p184
        %s279 = sand.u32 %s174, 1
        %s280 = scalar_lea.sflag [#allocation4], %s279
        %s281 = sand.u32 %s174, 1
        %s282 = smul.addr %s281, 2
        %s283 = scalar_lea.vmem [#allocation6], %s282
        %s284 = smul.u32 4, %s26
        %p285 = scmp.lt.s32.totalorder %s25, 1
        %s286 = scalar_select %p285, %s25, 1
        %p287 = scmp.lt.s32.totalorder %s284, 3
        %s288 = scalar_select %p287, %s284, 3
        %s289 = smul.addr %s288, 2
        %s290 = smul.addr %s286, 8
        %s291 = sadd.s32 %s289, %s290
        %s292 = smul.addr %s291, 8
        %s293 = scalar_lea.vmem %s0, %s292
        %s294 = smul.u32 4, %s26
        %p295 = scmp.eq.s32.totalorder %s26, 0
        // Predicated region
        $region49: #{tpu_custom_call.1} parent=43 // pred_check
          %p296 = pneg %p295
        $region50: #{tpu_custom_call.1} parent=43 // pred_check_branch
          %298 = sbr.rel (%p296) target = $region52
        $region51: #{tpu_custom_call.1} parent=43 // pred_region
          %299 = vst [vmem:[#allocation2] sm:$0xff] 0.0
          %300 = vst [vmem:[#allocation2 + $0x8] sm:$0xff] 0.0
        $region52: #{tpu_custom_call.1} parent=43 // pred_fallthru
          _
        %v301 = vld [vmem:[#allocation2] sm:$0xff]
        %v302 = vld [vmem:[#allocation2 + $0x8] sm:$0xff]
        %v303 = vld [vmem:[%s293] sm:$0xff]
        %v304 = vld [vmem:[%s293 + $0x8] sm:$0xff]
        %v305 = vld [vmem:[%s293 + $0x10] sm:$0xff]
        %v306 = vld [vmem:[%s293 + $0x18] sm:$0xff]
        %v307 = vld [vmem:[%s293 + $0x20] sm:$0xff]
        %v308 = vld [vmem:[%s293 + $0x28] sm:$0xff]
        %v309 = vld [vmem:[%s293 + $0x30] sm:$0xff]
        %v310 = vld [vmem:[%s293 + $0x38] sm:$0xff]
        %v311 = vadd.f32 %v303, %v305
        %v312 = vadd.f32 %v311, %v307
        %v313 = vadd.f32 %v312, %v309
        %v314 = vadd.f32 %v304, %v306
        %v315 = vadd.f32 %v314, %v308
        %v316 = vadd.f32 %v315, %v310
        %v317 = vadd.f32 %v301, %v313
        %v318 = vadd.f32 %v302, %v316
        %319 = vst [vmem:[#allocation2] sm:$0xff] %v317
        %320 = vst [vmem:[#allocation2 + $0x8] sm:$0xff] %v318
        // Predicated region
        $region53: #{tpu_custom_call.1} parent=43 // pred_check
          %p321 = pneg %p295
        $region54: #{tpu_custom_call.1} parent=43 // pred_check_branch
          %323 = sbr.rel (%p321) target = $region56
        $region55: #{tpu_custom_call.1} parent=43 // pred_region
          %s324 = sld [smem:[#allocation3]]
          %s325 = sld [smem:[#allocation3 + $0x1]]
          %s326 = sld [smem:[#allocation3 + $0x2]]
          %s327 = sld [smem:[#allocation3 + $0x3]]
          %v328 = vld [vmem:[#allocation2] sm:$0xff]
          %v329 = vld [vmem:[#allocation2 + $0x8] sm:$0xff]
          %v330 = vmul.f32 %v328, 0.25
          %v331 = vmul.f32 %v329, 0.25
          %v332 = vld [vmem:[%s1] sm:$0xff]
          %v333 = vld [vmem:[%s1 + $0x8] sm:$0xff]
          %v334 = vld [vmem:[%s1 + $0x10] sm:$0xff]
          %v335 = vld [vmem:[%s1 + $0x18] sm:$0xff]
          %v336 = vld [vmem:[%s1 + $0x20] sm:$0xff]
          %v337 = vld [vmem:[%s1 + $0x28] sm:$0xff]
          %v338 = vld [vmem:[%s1 + $0x30] sm:$0xff]
          %v339 = vld [vmem:[%s1 + $0x38] sm:$0xff]
          %v340 = vld [vmem:[%s1 + $0x40] sm:$0xff]
          %v341 = vld [vmem:[%s1 + $0x48] sm:$0xff]
          %v342 = vld [vmem:[%s1 + $0x50] sm:$0xff]
          %v343 = vld [vmem:[%s1 + $0x58] sm:$0xff]
          %v344 = vld [vmem:[%s1 + $0x60] sm:$0xff]
          %v345 = vld [vmem:[%s1 + $0x68] sm:$0xff]
          %v346 = vld [vmem:[%s1 + $0x70] sm:$0xff]
          %v347 = vld [vmem:[%s1 + $0x78] sm:$0xff]
          %v348 = vld [vmem:[%s1 + $0x80] sm:$0xff]
          %v349 = vld [vmem:[%s1 + $0x88] sm:$0xff]
          %v350 = vld [vmem:[%s1 + $0x90] sm:$0xff]
          %v351 = vld [vmem:[%s1 + $0x98] sm:$0xff]
          %v352 = vld [vmem:[%s1 + $0xa0] sm:$0xff]
          %v353 = vld [vmem:[%s1 + $0xa8] sm:$0xff]
          %v354 = vld [vmem:[%s1 + $0xb0] sm:$0xff]
          %v355 = vld [vmem:[%s1 + $0xb8] sm:$0xff]
          %v356 = vld [vmem:[%s1 + $0xc0] sm:$0xff]
          %v357 = vld [vmem:[%s1 + $0xc8] sm:$0xff]
          %v358 = vld [vmem:[%s1 + $0xd0] sm:$0xff]
          %v359 = vld [vmem:[%s1 + $0xd8] sm:$0xff]
          %v360 = vld [vmem:[%s1 + $0xe0] sm:$0xff]
          %v361 = vld [vmem:[%s1 + $0xe8] sm:$0xff]
          %v362 = vld [vmem:[%s1 + $0xf0] sm:$0xff]
          %v363 = vld [vmem:[%s1 + $0xf8] sm:$0xff]
          %364 = vmatprep.subr.mxu0 0.0
          %365 = vmatpush1.msra.mxu0 %v347
          %366 = vmatprep.subr.mxu0 0.0
          %367 = vmatpush1.msra.mxu0 %v346
          %368 = vmatprep.subr.mxu0 0.0
          %369 = vmatpush1.msra.mxu0 %v345
          %370 = vmatprep.subr.mxu0 0.0
          %371 = vmatpush1.msra.mxu0 %v344
          %372 = vmatprep.subr.mxu0 0.0
          %373 = vmatpush1.msra.mxu0 %v343
          %374 = vmatprep.subr.mxu0 0.0
          %375 = vmatpush1.msra.mxu0 %v342
          %376 = vmatprep.subr.mxu0 0.0
          %377 = vmatpush1.msra.mxu0 %v341
          %378 = vmatprep.subr.mxu0 0.0
          %379 = vmatpush1.msra.mxu0 %v340
          %380 = vmatprep.subr.mxu0 0.0
          %381 = vmatpush1.msra.mxu0 %v339
          %382 = vmatprep.subr.mxu0 0.0
          %383 = vmatpush1.msra.mxu0 %v338
          %384 = vmatprep.subr.mxu0 0.0
          %385 = vmatpush1.msra.mxu0 %v337
          %386 = vmatprep.subr.mxu0 0.0
          %387 = vmatpush1.msra.mxu0 %v336
          %388 = vmatprep.subr.mxu0 0.0
          %389 = vmatpush1.msra.mxu0 %v335
          %390 = vmatprep.subr.mxu0 0.0
          %391 = vmatpush1.msra.mxu0 %v334
          %392 = vmatprep.subr.mxu0 0.0
          %393 = vmatpush1.msra.mxu0 %v333
          %394 = vmatprep.subr.mxu0 0.0
          %395 = vmatpush1.msra.mxu0 %v332
          %396 = vmatprep.subr.mxu0 0.0
          %397 = vmatpush2.msra.mxu0 %v363
          %398 = vmatprep.subr.mxu0 0.0
          %399 = vmatpush2.msra.mxu0 %v362
          %400 = vmatprep.subr.mxu0 0.0
          %401 = vmatpush2.msra.mxu0 %v361
          %402 = vmatprep.subr.mxu0 0.0
          %403 = vmatpush2.msra.mxu0 %v360
          %404 = vmatprep.subr.mxu0 0.0
          %405 = vmatpush2.msra.mxu0 %v359
          %406 = vmatprep.subr.mxu0 0.0
          %407 = vmatpush2.msra.mxu0 %v358
          %408 = vmatprep.subr.mxu0 0.0
          %409 = vmatpush2.msra.mxu0 %v357
          %410 = vmatprep.subr.mxu0 0.0
          %411 = vmatpush2.msra.mxu0 %v356
          %412 = vmatprep.subr.mxu0 0.0
          %413 = vmatpush2.msra.mxu0 %v355
          %414 = vmatprep.subr.mxu0 0.0
          %415 = vmatpush2.msra.mxu0 %v354
          %416 = vmatprep.subr.mxu0 0.0
          %417 = vmatpush2.msra.mxu0 %v353
          %418 = vmatprep.subr.mxu0 0.0
          %419 = vmatpush2.msra.mxu0 %v352
          %420 = vmatprep.subr.mxu0 0.0
          %421 = vmatpush2.msra.mxu0 %v351
          %422 = vmatprep.subr.mxu0 0.0
          %423 = vmatpush2.msra.mxu0 %v350
          %424 = vmatprep.subr.mxu0 0.0
          %425 = vmatpush2.msra.mxu0 %v349
          %426 = vmatprep.subr.mxu0 0.0
          %427 = vmatpush2.msra.mxu0 %v348
          %428 = vmatprep.mubr.f32.mxu0 %v331
          %429 = vmatmul.mubr.f32.gmra.mxu0 %v330
          %v430 = vpop.f32.mrf.mxu0
          %v431 = vadd.f32 0.0, %v430
          %v432 = vpop.f32.mrf.mxu0
          %433 = vdwg.mxu0
          %s434 = scalar_lea.vmem %s1, 256
          %v435 = vld [vmem:[%s434] sm:$0xff]
          %v436 = vld [vmem:[%s434 + $0x8] sm:$0xff]
          %v437 = vld [vmem:[%s434 + $0x10] sm:$0xff]
          %v438 = vld [vmem:[%s434 + $0x18] sm:$0xff]
          %v439 = vld [vmem:[%s434 + $0x20] sm:$0xff]
          %v440 = vld [vmem:[%s434 + $0x28] sm:$0xff]
          %v441 = vld [vmem:[%s434 + $0x30] sm:$0xff]
          %v442 = vld [vmem:[%s434 + $0x38] sm:$0xff]
          %v443 = vld [vmem:[%s434 + $0x40] sm:$0xff]
          %v444 = vld [vmem:[%s434 + $0x48] sm:$0xff]
          %v445 = vld [vmem:[%s434 + $0x50] sm:$0xff]
          %v446 = vld [vmem:[%s434 + $0x58] sm:$0xff]
          %v447 = vld [vmem:[%s434 + $0x60] sm:$0xff]
          %v448 = vld [vmem:[%s434 + $0x68] sm:$0xff]
          %v449 = vld [vmem:[%s434 + $0x70] sm:$0xff]
          %v450 = vld [vmem:[%s434 + $0x78] sm:$0xff]
          %v451 = vld [vmem:[%s434 + $0x80] sm:$0xff]
          %v452 = vld [vmem:[%s434 + $0x88] sm:$0xff]
          %v453 = vld [vmem:[%s434 + $0x90] sm:$0xff]
          %v454 = vld [vmem:[%s434 + $0x98] sm:$0xff]
          %v455 = vld [vmem:[%s434 + $0xa0] sm:$0xff]
          %v456 = vld [vmem:[%s434 + $0xa8] sm:$0xff]
          %v457 = vld [vmem:[%s434 + $0xb0] sm:$0xff]
          %v458 = vld [vmem:[%s434 + $0xb8] sm:$0xff]
          %v459 = vld [vmem:[%s434 + $0xc0] sm:$0xff]
          %v460 = vld [vmem:[%s434 + $0xc8] sm:$0xff]
          %v461 = vld [vmem:[%s434 + $0xd0] sm:$0xff]
          %v462 = vld [vmem:[%s434 + $0xd8] sm:$0xff]
          %v463 = vld [vmem:[%s434 + $0xe0] sm:$0xff]
          %v464 = vld [vmem:[%s434 + $0xe8] sm:$0xff]
          %v465 = vld [vmem:[%s434 + $0xf0] sm:$0xff]
          %v466 = vld [vmem:[%s434 + $0xf8] sm:$0xff]
          %467 = vmatprep.subr.mxu0 0.0
          %468 = vmatpush1.msra.mxu0 %v450
          %469 = vmatprep.subr.mxu0 0.0
          %470 = vmatpush1.msra.mxu0 %v449
          %471 = vmatprep.subr.mxu0 0.0
          %472 = vmatpush1.msra.mxu0 %v448
          %473 = vmatprep.subr.mxu0 0.0
          %474 = vmatpush1.msra.mxu0 %v447
          %475 = vmatprep.subr.mxu0 0.0
          %476 = vmatpush1.msra.mxu0 %v446
          %477 = vmatprep.subr.mxu0 0.0
          %478 = vmatpush1.msra.mxu0 %v445
          %479 = vmatprep.subr.mxu0 0.0
          %480 = vmatpush1.msra.mxu0 %v444
          %481 = vmatprep.subr.mxu0 0.0
          %482 = vmatpush1.msra.mxu0 %v443
          %483 = vmatprep.subr.mxu0 0.0
          %484 = vmatpush1.msra.mxu0 %v442
          %485 = vmatprep.subr.mxu0 0.0
          %486 = vmatpush1.msra.mxu0 %v441
          %487 = vmatprep.subr.mxu0 0.0
          %488 = vmatpush1.msra.mxu0 %v440
          %489 = vmatprep.subr.mxu0 0.0
          %490 = vmatpush1.msra.mxu0 %v439
          %491 = vmatprep.subr.mxu0 0.0
          %492 = vmatpush1.msra.mxu0 %v438
          %493 = vmatprep.subr.mxu0 0.0
          %494 = vmatpush1.msra.mxu0 %v437
          %495 = vmatprep.subr.mxu0 0.0
          %496 = vmatpush1.msra.mxu0 %v436
          %497 = vmatprep.subr.mxu0 0.0
          %498 = vmatpush1.msra.mxu0 %v435
          %499 = vmatprep.subr.mxu0 0.0
          %500 = vmatpush2.msra.mxu0 %v466
          %501 = vmatprep.subr.mxu0 0.0
          %502 = vmatpush2.msra.mxu0 %v465
          %503 = vmatprep.subr.mxu0 0.0
          %504 = vmatpush2.msra.mxu0 %v464
          %505 = vmatprep.subr.mxu0 0.0
          %506 = vmatpush2.msra.mxu0 %v463
          %507 = vmatprep.subr.mxu0 0.0
          %508 = vmatpush2.msra.mxu0 %v462
          %509 = vmatprep.subr.mxu0 0.0
          %510 = vmatpush2.msra.mxu0 %v461
          %511 = vmatprep.subr.mxu0 0.0
          %512 = vmatpush2.msra.mxu0 %v460
          %513 = vmatprep.subr.mxu0 0.0
          %514 = vmatpush2.msra.mxu0 %v459
          %515 = vmatprep.subr.mxu0 0.0
          %516 = vmatpush2.msra.mxu0 %v458
          %517 = vmatprep.subr.mxu0 0.0
          %518 = vmatpush2.msra.mxu0 %v457
          %519 = vmatprep.subr.mxu0 0.0
          %520 = vmatpush2.msra.mxu0 %v456
          %521 = vmatprep.subr.mxu0 0.0
          %522 = vmatpush2.msra.mxu0 %v455
          %523 = vmatprep.subr.mxu0 0.0
          %524 = vmatpush2.msra.mxu0 %v454
          %525 = vmatprep.subr.mxu0 0.0
          %526 = vmatpush2.msra.mxu0 %v453
          %527 = vmatprep.subr.mxu0 0.0
          %528 = vmatpush2.msra.mxu0 %v452
          %529 = vmatprep.subr.mxu0 0.0
          %530 = vmatpush2.msra.mxu0 %v451
          %531 = vmatprep.mubr.f32.mxu0 %v331
          %532 = vmatmul.mubr.f32.gmra.mxu0 %v330
          %v533 = vpop.f32.mrf.mxu0
          %v534 = vadd.f32 0.0, %v533
          %v535 = vpop.f32.mrf.mxu0
          %536 = vdwg.mxu0
          %s537 = scalar_lea.vmem %s1, 512
          %v538 = vld [vmem:[%s537] sm:$0xff]
          %v539 = vld [vmem:[%s537 + $0x8] sm:$0xff]
          %v540 = vld [vmem:[%s537 + $0x10] sm:$0xff]
          %v541 = vld [vmem:[%s537 + $0x18] sm:$0xff]
          %v542 = vld [vmem:[%s537 + $0x20] sm:$0xff]
          %v543 = vld [vmem:[%s537 + $0x28] sm:$0xff]
          %v544 = vld [vmem:[%s537 + $0x30] sm:$0xff]
          %v545 = vld [vmem:[%s537 + $0x38] sm:$0xff]
          %v546 = vld [vmem:[%s537 + $0x40] sm:$0xff]
          %v547 = vld [vmem:[%s537 + $0x48] sm:$0xff]
          %v548 = vld [vmem:[%s537 + $0x50] sm:$0xff]
          %v549 = vld [vmem:[%s537 + $0x58] sm:$0xff]
          %v550 = vld [vmem:[%s537 + $0x60] sm:$0xff]
          %v551 = vld [vmem:[%s537 + $0x68] sm:$0xff]
          %v552 = vld [vmem:[%s537 + $0x70] sm:$0xff]
          %v553 = vld [vmem:[%s537 + $0x78] sm:$0xff]
          %v554 = vld [vmem:[%s537 + $0x80] sm:$0xff]
          %v555 = vld [vmem:[%s537 + $0x88] sm:$0xff]
          %v556 = vld [vmem:[%s537 + $0x90] sm:$0xff]
          %v557 = vld [vmem:[%s537 + $0x98] sm:$0xff]
          %v558 = vld [vmem:[%s537 + $0xa0] sm:$0xff]
          %v559 = vld [vmem:[%s537 + $0xa8] sm:$0xff]
          %v560 = vld [vmem:[%s537 + $0xb0] sm:$0xff]
          %v561 = vld [vmem:[%s537 + $0xb8] sm:$0xff]
          %v562 = vld [vmem:[%s537 + $0xc0] sm:$0xff]
          %v563 = vld [vmem:[%s537 + $0xc8] sm:$0xff]
          %v564 = vld [vmem:[%s537 + $0xd0] sm:$0xff]
          %v565 = vld [vmem:[%s537 + $0xd8] sm:$0xff]
          %v566 = vld [vmem:[%s537 + $0xe0] sm:$0xff]
          %v567 = vld [vmem:[%s537 + $0xe8] sm:$0xff]
          %v568 = vld [vmem:[%s537 + $0xf0] sm:$0xff]
          %v569 = vld [vmem:[%s537 + $0xf8] sm:$0xff]
          %570 = vmatprep.subr.mxu0 0.0
          %571 = vmatpush1.msra.mxu0 %v553
          %572 = vmatprep.subr.mxu0 0.0
          %573 = vmatpush1.msra.mxu0 %v552
          %574 = vmatprep.subr.mxu0 0.0
          %575 = vmatpush1.msra.mxu0 %v551
          %576 = vmatprep.subr.mxu0 0.0
          %577 = vmatpush1.msra.mxu0 %v550
          %578 = vmatprep.subr.mxu0 0.0
          %579 = vmatpush1.msra.mxu0 %v549
          %580 = vmatprep.subr.mxu0 0.0
          %581 = vmatpush1.msra.mxu0 %v548
          %582 = vmatprep.subr.mxu0 0.0
          %583 = vmatpush1.msra.mxu0 %v547
          %584 = vmatprep.subr.mxu0 0.0
          %585 = vmatpush1.msra.mxu0 %v546
          %586 = vmatprep.subr.mxu0 0.0
          %587 = vmatpush1.msra.mxu0 %v545
          %588 = vmatprep.subr.mxu0 0.0
          %589 = vmatpush1.msra.mxu0 %v544
          %590 = vmatprep.subr.mxu0 0.0
          %591 = vmatpush1.msra.mxu0 %v543
          %592 = vmatprep.subr.mxu0 0.0
          %593 = vmatpush1.msra.mxu0 %v542
          %594 = vmatprep.subr.mxu0 0.0
          %595 = vmatpush1.msra.mxu0 %v541
          %596 = vmatprep.subr.mxu0 0.0
          %597 = vmatpush1.msra.mxu0 %v540
          %598 = vmatprep.subr.mxu0 0.0
          %599 = vmatpush1.msra.mxu0 %v539
          %600 = vmatprep.subr.mxu0 0.0
          %601 = vmatpush1.msra.mxu0 %v538
          %602 = vmatprep.subr.mxu0 0.0
          %603 = vmatpush2.msra.mxu0 %v569
          %604 = vmatprep.subr.mxu0 0.0
          %605 = vmatpush2.msra.mxu0 %v568
          %606 = vmatprep.subr.mxu0 0.0
          %607 = vmatpush2.msra.mxu0 %v567
          %608 = vmatprep.subr.mxu0 0.0
          %609 = vmatpush2.msra.mxu0 %v566
          %610 = vmatprep.subr.mxu0 0.0
          %611 = vmatpush2.msra.mxu0 %v565
          %612 = vmatprep.subr.mxu0 0.0
          %613 = vmatpush2.msra.mxu0 %v564
          %614 = vmatprep.subr.mxu0 0.0
          %615 = vmatpush2.msra.mxu0 %v563
          %616 = vmatprep.subr.mxu0 0.0
          %617 = vmatpush2.msra.mxu0 %v562
          %618 = vmatprep.subr.mxu0 0.0
          %619 = vmatpush2.msra.mxu0 %v561
          %620 = vmatprep.subr.mxu0 0.0
          %621 = vmatpush2.msra.mxu0 %v560
          %622 = vmatprep.subr.mxu0 0.0
          %623 = vmatpush2.msra.mxu0 %v559
          %624 = vmatprep.subr.mxu0 0.0
          %625 = vmatpush2.msra.mxu0 %v558
          %626 = vmatprep.subr.mxu0 0.0
          %627 = vmatpush2.msra.mxu0 %v557
          %628 = vmatprep.subr.mxu0 0.0
          %629 = vmatpush2.msra.mxu0 %v556
          %630 = vmatprep.subr.mxu0 0.0
          %631 = vmatpush2.msra.mxu0 %v555
          %632 = vmatprep.subr.mxu0 0.0
          %633 = vmatpush2.msra.mxu0 %v554
          %634 = vmatprep.mubr.f32.mxu0 %v331
          %635 = vmatmul.mubr.f32.gmra.mxu0 %v330
          %v636 = vpop.f32.mrf.mxu0
          %v637 = vadd.f32 0.0, %v636
          %v638 = vpop.f32.mrf.mxu0
          %639 = vdwg.mxu0
          %v640 = vld [vmem:[%s2] sm:$0xf]
          %vm641 = vcmask 195584
          %v643 = vsel %vm641, %v640, 0
          %645 = vmatprep.subr.mxu0 0.0
          %646 = vmatpush1.msra.mxu0 0.0
          %647 = vmatprep.subr.mxu0 0.0
          %648 = vmatpush1.msra.mxu0 0.0
          %649 = vmatprep.subr.mxu0 0.0
          %650 = vmatpush1.msra.mxu0 0.0
          %651 = vmatprep.subr.mxu0 0.0
          %652 = vmatpush1.msra.mxu0 0.0
          %653 = vmatprep.subr.mxu0 0.0
          %654 = vmatpush1.msra.mxu0 0.0
          %655 = vmatprep.subr.mxu0 0.0
          %656 = vmatpush1.msra.mxu0 0.0
          %657 = vmatprep.subr.mxu0 0.0
          %658 = vmatpush1.msra.mxu0 0.0
          %659 = vmatprep.subr.mxu0 0.0
          %660 = vmatpush1.msra.mxu0 0.0
          %661 = vmatprep.subr.mxu0 0.0
          %662 = vmatpush1.msra.mxu0 0.0
          %663 = vmatprep.subr.mxu0 0.0
          %664 = vmatpush1.msra.mxu0 0.0
          %665 = vmatprep.subr.mxu0 0.0
          %666 = vmatpush1.msra.mxu0 0.0
          %667 = vmatprep.subr.mxu0 0.0
          %668 = vmatpush1.msra.mxu0 0.0
          %669 = vmatprep.subr.mxu0 0.0
          %670 = vmatpush1.msra.mxu0 0.0
          %671 = vmatprep.subr.mxu0 0.0
          %672 = vmatpush1.msra.mxu0 %v637
          %673 = vmatprep.subr.mxu0 0.0
          %674 = vmatpush1.msra.mxu0 %v534
          %675 = vmatprep.subr.mxu0 0.0
          %676 = vmatpush1.msra.mxu0 %v431
          %677 = vmatprep.subr.mxu0 0.0
          %678 = vmatpush2.msra.mxu0 0.0
          %679 = vmatprep.subr.mxu0 0.0
          %680 = vmatpush2.msra.mxu0 0.0
          %681 = vmatprep.subr.mxu0 0.0
          %682 = vmatpush2.msra.mxu0 0.0
          %683 = vmatprep.subr.mxu0 0.0
          %684 = vmatpush2.msra.mxu0 0.0
          %685 = vmatprep.subr.mxu0 0.0
          %686 = vmatpush2.msra.mxu0 0.0
          %687 = vmatprep.subr.mxu0 0.0
          %688 = vmatpush2.msra.mxu0 0.0
          %689 = vmatprep.subr.mxu0 0.0
          %690 = vmatpush2.msra.mxu0 0.0
          %691 = vmatprep.subr.mxu0 0.0
          %692 = vmatpush2.msra.mxu0 0.0
          %693 = vmatprep.subr.mxu0 0.0
          %694 = vmatpush2.msra.mxu0 0.0
          %695 = vmatprep.subr.mxu0 0.0
          %696 = vmatpush2.msra.mxu0 0.0
          %697 = vmatprep.subr.mxu0 0.0
          %698 = vmatpush2.msra.mxu0 0.0
          %699 = vmatprep.subr.mxu0 0.0
          %700 = vmatpush2.msra.mxu0 0.0
          %701 = vmatprep.subr.mxu0 0.0
          %702 = vmatpush2.msra.mxu0 0.0
          %703 = vmatprep.subr.mxu0 0.0
          %704 = vmatpush2.msra.mxu0 0.0
          %705 = vmatprep.subr.mxu0 0.0
          %706 = vmatpush2.msra.mxu0 0.0
          %707 = vmatprep.subr.mxu0 0.0
          %708 = vmatpush2.msra.mxu0 0.0
          %709 = vmatprep.mubr.f32.mxu0 0.0
          %710 = vmatmul.mubr.f32.gmra.mxu0 %v643
          %v711 = vpop.f32.mrf.mxu0
          %v712 = vadd.f32 0.0, %v711
          %v713 = vpop.f32.mrf.mxu0
          %714 = vdwg.mxu0
          %v715 = vstv %s324
          %v716 = vmul.f32 %v712, %v715
          %v717 = vstv %s325
          %v718 = vadd.f32 %v716, %v717
          %v719 = vmax.f32 %v718, 0.0
          %v720 = vld [vmem:[%s3] sm:$0xff]
          %v721 = vld [vmem:[%s3 + $0x8] sm:$0xff]
          %v722 = vld [vmem:[%s3 + $0x10] sm:$0xff]
          %v723 = vld [vmem:[%s3 + $0x18] sm:$0xff]
          %v724 = vld [vmem:[%s3 + $0x20] sm:$0xff]
          %v725 = vld [vmem:[%s3 + $0x28] sm:$0xff]
          %v726 = vld [vmem:[%s3 + $0x30] sm:$0xff]
          %v727 = vld [vmem:[%s3 + $0x38] sm:$0xff]
          %v728 = vld [vmem:[%s3 + $0x40] sm:$0xff]
          %v729 = vld [vmem:[%s3 + $0x48] sm:$0xff]
          %v730 = vld [vmem:[%s3 + $0x50] sm:$0xff]
          %v731 = vld [vmem:[%s3 + $0x58] sm:$0xff]
          %v732 = vld [vmem:[%s3 + $0x60] sm:$0xff]
          %v733 = vld [vmem:[%s3 + $0x68] sm:$0xff]
          %v734 = vld [vmem:[%s3 + $0x70] sm:$0xff]
          %v735 = vld [vmem:[%s3 + $0x78] sm:$0xff]
          %vm736 = vcmask 523264
          %v738 = vsel %vm736, %v719, 0
          %740 = vmatprep.subr.mxu0 0.0
          %741 = vmatpush1.msra.mxu0 0.0
          %742 = vmatprep.subr.mxu0 0.0
          %743 = vmatpush1.msra.mxu0 0.0
          %744 = vmatprep.subr.mxu0 0.0
          %745 = vmatpush1.msra.mxu0 0.0
          %746 = vmatprep.subr.mxu0 0.0
          %747 = vmatpush1.msra.mxu0 0.0
          %748 = vmatprep.subr.mxu0 0.0
          %749 = vmatpush1.msra.mxu0 0.0
          %750 = vmatprep.subr.mxu0 0.0
          %751 = vmatpush1.msra.mxu0 0.0
          %752 = vmatprep.subr.mxu0 0.0
          %753 = vmatpush1.msra.mxu0 0.0
          %754 = vmatprep.subr.mxu0 0.0
          %755 = vmatpush1.msra.mxu0 0.0
          %756 = vmatprep.subr.mxu0 %v735
          %757 = vmatpush1.msra.mxu0 %v734
          %758 = vmatprep.subr.mxu0 %v733
          %759 = vmatpush1.msra.mxu0 %v732
          %760 = vmatprep.subr.mxu0 %v731
          %761 = vmatpush1.msra.mxu0 %v730
          %762 = vmatprep.subr.mxu0 %v729
          %763 = vmatpush1.msra.mxu0 %v728
          %764 = vmatprep.subr.mxu0 %v727
          %765 = vmatpush1.msra.mxu0 %v726
          %766 = vmatprep.subr.mxu0 %v725
          %767 = vmatpush1.msra.mxu0 %v724
          %768 = vmatprep.subr.mxu0 %v723
          %769 = vmatpush1.msra.mxu0 %v722
          %770 = vmatprep.subr.mxu0 %v721
          %771 = vmatpush1.msra.mxu0 %v720
          %772 = vmatprep.subr.mxu0 0.0
          %773 = vmatpush2.msra.mxu0 0.0
          %774 = vmatprep.subr.mxu0 0.0
          %775 = vmatpush2.msra.mxu0 0.0
          %776 = vmatprep.subr.mxu0 0.0
          %777 = vmatpush2.msra.mxu0 0.0
          %778 = vmatprep.subr.mxu0 0.0
          %779 = vmatpush2.msra.mxu0 0.0
          %780 = vmatprep.subr.mxu0 0.0
          %781 = vmatpush2.msra.mxu0 0.0
          %782 = vmatprep.subr.mxu0 0.0
          %783 = vmatpush2.msra.mxu0 0.0
          %784 = vmatprep.subr.mxu0 0.0
          %785 = vmatpush2.msra.mxu0 0.0
          %786 = vmatprep.subr.mxu0 0.0
          %787 = vmatpush2.msra.mxu0 0.0
          %788 = vmatprep.subr.mxu0 0.0
          %789 = vmatpush2.msra.mxu0 0.0
          %790 = vmatprep.subr.mxu0 0.0
          %791 = vmatpush2.msra.mxu0 0.0
          %792 = vmatprep.subr.mxu0 0.0
          %793 = vmatpush2.msra.mxu0 0.0
          %794 = vmatprep.subr.mxu0 0.0
          %795 = vmatpush2.msra.mxu0 0.0
          %796 = vmatprep.subr.mxu0 0.0
          %797 = vmatpush2.msra.mxu0 0.0
          %798 = vmatprep.subr.mxu0 0.0
          %799 = vmatpush2.msra.mxu0 0.0
          %800 = vmatprep.subr.mxu0 0.0
          %801 = vmatpush2.msra.mxu0 0.0
          %802 = vmatprep.subr.mxu0 0.0
          %803 = vmatpush2.msra.mxu0 0.0
          %804 = vmatprep.mubr.f32.mxu0 0.0
          %805 = vmatmul.mubr.f32.gmra.mxu0 %v738
          %v806 = vpop.f32.mrf.mxu0
          %v807 = vadd.f32 0.0, %v806
          %v808 = vpop.f32.mrf.mxu0
          %v809 = vadd.f32 0.0, %v808
          %810 = vdwg.mxu0
          %v811 = vld [vmem:[%s4] sm:$0xff]
          %vm812 = vcmask 31744
          %v814 = vsel %vm812, %v811, 0
          %vm816 = vcmask 1043456
          %v818 = vsel %vm816, %v807, 0
          %v821 = vsel %vm816, %v809, 0
          %823 = vmatprep.subr.mxu0 0.0
          %824 = vmatpush1.msra.mxu0 0.0
          %825 = vmatprep.subr.mxu0 0.0
          %826 = vmatpush1.msra.mxu0 0.0
          %827 = vmatprep.subr.mxu0 0.0
          %828 = vmatpush1.msra.mxu0 0.0
          %829 = vmatprep.subr.mxu0 0.0
          %830 = vmatpush1.msra.mxu0 0.0
          %831 = vmatprep.subr.mxu0 0.0
          %832 = vmatpush1.msra.mxu0 0.0
          %833 = vmatprep.subr.mxu0 0.0
          %834 = vmatpush1.msra.mxu0 0.0
          %835 = vmatprep.subr.mxu0 0.0
          %836 = vmatpush1.msra.mxu0 0.0
          %837 = vmatprep.subr.mxu0 0.0
          %838 = vmatpush1.msra.mxu0 0.0
          %839 = vmatprep.subr.mxu0 0.0
          %840 = vmatpush1.msra.mxu0 0.0
          %841 = vmatprep.subr.mxu0 0.0
          %842 = vmatpush1.msra.mxu0 0.0
          %843 = vmatprep.subr.mxu0 0.0
          %844 = vmatpush1.msra.mxu0 0.0
          %845 = vmatprep.subr.mxu0 0.0
          %846 = vmatpush1.msra.mxu0 0.0
          %847 = vmatprep.subr.mxu0 0.0
          %848 = vmatpush1.msra.mxu0 0.0
          %849 = vmatprep.subr.mxu0 0.0
          %850 = vmatpush1.msra.mxu0 0.0
          %851 = vmatprep.subr.mxu0 0.0
          %852 = vmatpush1.msra.mxu0 0.0
          %853 = vmatprep.subr.mxu0 %v821
          %854 = vmatpush1.msra.mxu0 %v818
          %855 = vmatprep.subr.mxu0 0.0
          %856 = vmatpush2.msra.mxu0 0.0
          %857 = vmatprep.subr.mxu0 0.0
          %858 = vmatpush2.msra.mxu0 0.0
          %859 = vmatprep.subr.mxu0 0.0
          %860 = vmatpush2.msra.mxu0 0.0
          %861 = vmatprep.subr.mxu0 0.0
          %862 = vmatpush2.msra.mxu0 0.0
          %863 = vmatprep.subr.mxu0 0.0
          %864 = vmatpush2.msra.mxu0 0.0
          %865 = vmatprep.subr.mxu0 0.0
          %866 = vmatpush2.msra.mxu0 0.0
          %867 = vmatprep.subr.mxu0 0.0
          %868 = vmatpush2.msra.mxu0 0.0
          %869 = vmatprep.subr.mxu0 0.0
          %870 = vmatpush2.msra.mxu0 0.0
          %871 = vmatprep.subr.mxu0 0.0
          %872 = vmatpush2.msra.mxu0 0.0
          %873 = vmatprep.subr.mxu0 0.0
          %874 = vmatpush2.msra.mxu0 0.0
          %875 = vmatprep.subr.mxu0 0.0
          %876 = vmatpush2.msra.mxu0 0.0
          %877 = vmatprep.subr.mxu0 0.0
          %878 = vmatpush2.msra.mxu0 0.0
          %879 = vmatprep.subr.mxu0 0.0
          %880 = vmatpush2.msra.mxu0 0.0
          %881 = vmatprep.subr.mxu0 0.0
          %882 = vmatpush2.msra.mxu0 0.0
          %883 = vmatprep.subr.mxu0 0.0
          %884 = vmatpush2.msra.mxu0 0.0
          %885 = vmatprep.subr.mxu0 0.0
          %886 = vmatpush2.msra.mxu0 0.0
          %887 = vmatprep.mubr.f32.mxu0 0.0
          %888 = vmatmul.mubr.f32.gmra.mxu0 %v814
          %v889 = vpop.f32.mrf.mxu0
          %v890 = vadd.f32 0.0, %v889
          %v891 = vpop.f32.mrf.mxu0
          %v892 = vadd.f32 0.0, %v891
          %893 = vdwg.mxu0
          %v894 = vstv %s326
          %v895 = vmul.f32 %v890, %v894
          %v896 = vmul.f32 %v892, %v894
          %v897 = vstv %s327
          %v898 = vadd.f32 %v895, %v897
          %v899 = vadd.f32 %v896, %v897
          %v900 = vmax.f32 %v898, 0.0
          %v901 = vmax.f32 %v899, 0.0
          %v902 = vrot.slane %v900, 4
          %v903 = vadd.f32 %v900, %v902
          %v904 = vrot.slane %v903, 2
          %v905 = vadd.f32 %v903, %v904
          %v906 = vrot.slane %v905, 1
          %v907 = vadd.f32 %v905, %v906
          %v908 = vrot.slane %v901, 4
          %v909 = vadd.f32 %v901, %v908
          %v910 = vrot.slane %v909, 2
          %v911 = vadd.f32 %v909, %v910
          %v912 = vrot.slane %v911, 1
          %v913 = vadd.f32 %v911, %v912
          %v914 = vmul.f32 %v907, 0.125
          %v915 = vmul.f32 %v913, 0.125
          %v918 = vcombine.low %v914, %v915
          %v920 = vunpack.c.l.s4 1966171168
          %v921 = vunpack.c.0.s8 %v920
          %v922 = vlaneseq
          %v923 = vshrl.u32 %v922, 7
          %v924 = vsub.s32 %v921, %v923
          %v925 = vrot.slane %v918, %v924
          %v927 = vunpack.c.l.s4 1966171168
          %v928 = vunpack.c.0.s8 %v927
          %v929 = vlaneseq
          %v930 = vshrl.u32 %v929, 7
          %v931 = vsub.s32 %v928, %v930
          %v932 = vrot.slane %v925, %v931
          %v934 = vlaneseq
          %vm935 = vcmp.ge.s32.totalorder %v934, 0
          %vm936 = vcmp.lt.s32.totalorder %v934, 256
          %vm937 = vmand %vm935, %vm936
          %938 = vst.msk [vmem:[%s283] sm:$0x3] %vm937, %v932
        $region56: #{tpu_custom_call.1} parent=43 // pred_fallthru
          _
        %s939 = sand.u32 %s174, 1
        %s940 = scalar_lea.sflag [#allocation4], %s939
        %s941 = sand.u32 %s174, 1
        %s942 = smul.addr %s941, 2
        %s943 = scalar_lea.vmem [#allocation6], %s942
        // Predicated region
        $region57: #{tpu_custom_call.1} parent=43 // pred_check
          %p944 = pneg %p184
        $region58: #{tpu_custom_call.1} parent=43 // pred_check_branch
          %946 = sbr.rel (%p944) target = $region60
        $region59: #{tpu_custom_call.1} parent=43 // pred_region
          %s948 = ssub.s32 32, 32
          %949 = vsyncadd %s940, %s948
          %s950 = smul.addr %s25, 2
          %s951 = smul.addr %s950, 16
          %s952 = scalar_lea.hbm %s6, %s951
          %s954 = sshll.u32 %s943, 4
          %s955 = int_to_ptr.vmem [resolvable:$true] %s954
          %957 = dma.vmem_to_hbm [thread:$0]  %s955, 32, %s952, %s940
        $region60: #{tpu_custom_call.1} parent=43 // pred_fallthru
          _
      $region44: #{tpu_custom_call.1} parent=5 // pred_fallthru
        _
      %p958 = scmp.le.s32.totalorder 2, %s16
      // Predicated region
      $region61: #{tpu_custom_call.1} parent=5 // pred_check
        %p959 = pneg %p958
      $region62: #{tpu_custom_call.1} parent=5 // pred_check_branch
        %961 = sbr.rel (%p959) target = $region64
      $region63: #{tpu_custom_call.1} parent=5 // pred_region
        %s962 = ssub.s32 %s16, 2
        // Predicated region
        $region65: #{tpu_custom_call.1} parent=63 // pred_check
          %p963 = pneg %p190
        $region66: #{tpu_custom_call.1} parent=63 // pred_check_branch
          %965 = sbr.rel (%p963) target = $region68
        $region67: #{tpu_custom_call.1} parent=63 // pred_region
          %s966 = sand.u32 %s175, 1
          %s967 = scalar_lea.sflag [#allocation4], %s966
          %s968 = sand.u32 %s175, 1
          %s969 = smul.addr %s968, 2
          %s970 = scalar_lea.vmem [#allocation6], %s969
          %971 = dma.done %s967, 32
        $region68: #{tpu_custom_call.1} parent=63 // pred_fallthru
          _
      $region64: #{tpu_custom_call.1} parent=5 // pred_fallthru
        _
    $region6: #{tpu_custom_call.1} parent=1 // loop_footer
      %s20 = sadd.s32 1, %s16
    $region7: #{tpu_custom_call.1} parent=1 // loop_footer_branch
      %15 = sbr.rel target = $region3
    $region8: #{tpu_custom_call.1} parent=1 // loop_exit
      _
    %972 = vsyncpa [#allocation4], 1
    %s973 = scalar_lea.sflag [#allocation4], 1
    %974 = vsyncpa %s973, 1
    %975 = vsyncpa [#allocation5], 1
    %s976 = scalar_lea.sflag [#allocation5], 1
    %977 = vsyncpa %s976, 1

</llo_original>
